<compile_context>
chip_gen: v7x
topology: tpu7x:2x2x1
jax: 0.10.0
libtpu: 0.0.40
codegen_flags: <defaults>
</compile_context>

<pallas_src>
import jax
import jax.numpy as jnp
import numpy as np
from jax.experimental import pallas as pl
from jax.experimental.pallas import tpu as pltpu


# ----------------------------------------------------------------------------
# Fused Pallas kernel
# ----------------------------------------------------------------------------

def _spatial_attn_kernel(w_ref, x_ref, o_ref, pool_ref):
    # w_ref   : SMEM (18,) f32 spatial-conv weights, index = (ky*3 + kx)*2 + ci,
    #           ci: 0 = channel-max map, 1 = channel-mean map.
    # x_ref   : VMEM (1, C, H, W) input block for one batch element (NCHW).
    # o_ref   : VMEM (1, C, H, W) output block.
    # pool_ref: VMEM (2, H+2, W+2) f32 scratch holding the zero-padded
    #           [max, mean] channel-pool maps (the "x_compress" tensor).
    C = x_ref.shape[1]
    H = x_ref.shape[2]
    W = x_ref.shape[3]

    x = x_ref[0].astype(jnp.float32)                      # (C, H, W)

    # --- ChannelPool: max & mean over the channel (leading) axis. Reducing the
    # major axis is pure VPU work (no cross-lane shuffles). Zero the scratch so
    # the 1-pixel halo implements padding=1 of the conv.
    pool_ref[...] = jnp.zeros_like(pool_ref)
    pool_ref[0, 1:H + 1, 1:W + 1] = jnp.max(x, axis=0)
    pool_ref[1, 1:H + 1, 1:W + 1] = jnp.mean(x, axis=0)

    # --- BasicConv(2, 1, 3, padding=1, bias=False, bn=False, relu=False):
    # far too small for the MXU — do it as 18 scalar-weighted shifted adds on
    # the VPU, reading shifted (H, W) windows straight from the VMEM scratch.
    acc = jnp.zeros((H, W), jnp.float32)
    for ky in range(3):
        for kx in range(3):
            base = (ky * 3 + kx) * 2
            acc = acc + w_ref[base] * pool_ref[0, ky:ky + H, kx:kx + W] \
                      + w_ref[base + 1] * pool_ref[1, ky:ky + H, kx:kx + W]

    # --- sigmoid (EUP exp + approx reciprocal) and per-channel broadcast scale.
    scale = pl.reciprocal(1.0 + jnp.exp(-acc), approx=True)       # (H, W)
    o_ref[0] = (x * scale).astype(o_ref.dtype)                    # broadcast over C


def spatial_attn_layer(x, w):
    """Fused spatial attention layer.

    x: (N, C, H, W) activations (PyTorch NCHW layout).
    w: (1, 2, 3, 3) OIHW conv weight of BasicConv(2, 1, 3) (no bias, no BN).
    """
    N, C, H, W = x.shape
    # Flatten weight to [ky, kx, ci] order -> index (ky*3 + kx)*2 + ci.
    w_flat = jnp.transpose(w[0], (1, 2, 0)).reshape(-1).astype(jnp.float32)  # (18,)

    return pl.pallas_call(
        _spatial_attn_kernel,
        out_shape=jax.ShapeDtypeStruct((N, C, H, W), x.dtype),
        grid=(N,),
        in_specs=[
            pl.BlockSpec(memory_space=pltpu.MemorySpace.SMEM),      # w_flat (18,)
            pl.BlockSpec((1, C, H, W), lambda n: (n, 0, 0, 0)),     # x, one image
        ],
        out_specs=pl.BlockSpec((1, C, H, W), lambda n: (n, 0, 0, 0)),
        scratch_shapes=[pltpu.VMEM((2, H + 2, W + 2), jnp.float32)],
        compiler_params=pltpu.CompilerParams(
            dimension_semantics=("parallel",)),                     # v7x: 1 image/TC
    )(w_flat, x)


# ----------------------------------------------------------------------------
# Pure-JAX reference (for correctness check only)
# ----------------------------------------------------------------------------

def spatial_attn_ref(x, w):
    mx = jnp.max(x, axis=1, keepdims=True)
    mn = jnp.mean(x, axis=1, keepdims=True)
    comp = jnp.concatenate([mx, mn], axis=1)                        # (N, 2, H, W)
    logits = jax.lax.conv_general_dilated(
        comp, w, window_strides=(1, 1), padding=((1, 1), (1, 1)),
        dimension_numbers=("NCHW", "OIHW", "NCHW"),
        precision=jax.lax.Precision.HIGHEST)
    scale = jax.nn.sigmoid(logits)
    return x * scale


# ----------------------------------------------------------------------------
# Main
# ----------------------------------------------------------------------------

if __name__ == "__main__":
    key = jax.random.PRNGKey(0)
    N, C, H, W = 2, 16, 16, 16

    k_x, k_w = jax.random.split(key)
    x = jax.random.normal(k_x, (N, C, H, W), jnp.float32)           # NCHW like PyTorch
    w = jax.random.normal(k_w, (1, 2, 3, 3), jnp.float32) * 0.5     # OIHW, bias=False

    out = spatial_attn_layer(x, w)
    out = jax.block_until_ready(out)
    assert out.shape == (N, C, H, W), out.shape

    ref = spatial_attn_ref(x, w)
    np.testing.assert_allclose(np.asarray(out), np.asarray(ref), atol=2e-2, rtol=2e-2)

    print("KERNEL_OK")
</pallas_src>

<mosaic_0001>
module attributes {stable_mosaic.version = 11 : i64} {
  func.func @_spatial_attn_kernel(%arg0: i32, %arg1: memref<18xf32, #tpu.memory_space<smem>>, %arg2: memref<1x16x16x16xf32, #tpu.memory_space<vmem>>, %arg3: memref<1x16x16x16xf32, #tpu.memory_space<vmem>>, %arg4: memref<2x18x18xf32, #tpu.memory_space<vmem>>) attributes {dimension_semantics = [#tpu.dimension_semantics<parallel>], iteration_bounds = array<i64: 2>, scalar_prefetch = 0 : i64, scratch_operands = 1 : i64, tpu.core_type = #tpu.core_type<tc>, window_params = [{transform_indices = @transform_0, window_bounds = array<i64: 18>}, {transform_indices = @transform_1, window_bounds = array<i64: 1, 16, 16, 16>}, {transform_indices = @transform_2, window_bounds = array<i64: 1, 16, 16, 16>}]} {
    %c0 = arith.constant 0 : index
    %c0_0 = arith.constant 0 : index
    %c0_1 = arith.constant 0 : index
    %c0_2 = arith.constant 0 : index
    %0 = vector.load %arg2[%c0, %c0_0, %c0_1, %c0_2] : memref<1x16x16x16xf32, #tpu.memory_space<vmem>>, vector<1x16x16x16xf32>
    %1 = vector.shape_cast %0 : vector<1x16x16x16xf32> to vector<16x16x16xf32>
    %cst = arith.constant 0.000000e+00 : f32
    %2 = vector.broadcast %cst : f32 to vector<2x18x18xf32>
    %c0_3 = arith.constant 0 : index
    %c0_4 = arith.constant 0 : index
    %c0_5 = arith.constant 0 : index
    %3 = vector.load %arg4[%c0_3, %c0_4, %c0_5] : memref<2x18x18xf32, #tpu.memory_space<vmem>>, vector<2x18x18xf32>
    tpu.vector_store %arg4[%c0_3, %c0_4, %c0_5], %2 {strides = array<i32>} : memref<2x18x18xf32, #tpu.memory_space<vmem>>, vector<2x18x18xf32>,
    %cst_6 = arith.constant dense<0xFF800000> : vector<16x16xf32>
    %4 = vector.multi_reduction <maximumf>, %1, %cst_6 [0] : vector<16x16x16xf32> to vector<16x16xf32>
    %c0_7 = arith.constant 0 : index
    %c1 = arith.constant 1 : index
    %c1_8 = arith.constant 1 : index
    %5 = vector.load %arg4[%c0_7, %c1, %c1_8] : memref<2x18x18xf32, #tpu.memory_space<vmem>>, vector<1x16x16xf32>
    %6 = vector.shape_cast %5 : vector<1x16x16xf32> to vector<16x16xf32>
    %7 = vector.shape_cast %4 : vector<16x16xf32> to vector<1x16x16xf32>
    tpu.vector_store %arg4[%c0_7, %c1, %c1_8], %7 {strides = array<i32>} : memref<2x18x18xf32, #tpu.memory_space<vmem>>, vector<1x16x16xf32>,
    %cst_9 = arith.constant dense<0.000000e+00> : vector<16x16xf32>
    %8 = vector.multi_reduction <add>, %1, %cst_9 [0] : vector<16x16x16xf32> to vector<16x16xf32>
    %cst_10 = arith.constant 1.600000e+01 : f32
    %9 = vector.broadcast %cst_10 : f32 to vector<16x16xf32>
    %10 = arith.divf %8, %9 : vector<16x16xf32>
    %c1_11 = arith.constant 1 : index
    %c1_12 = arith.constant 1 : index
    %c1_13 = arith.constant 1 : index
    %11 = vector.load %arg4[%c1_11, %c1_12, %c1_13] : memref<2x18x18xf32, #tpu.memory_space<vmem>>, vector<1x16x16xf32>
    %12 = vector.shape_cast %11 : vector<1x16x16xf32> to vector<16x16xf32>
    %13 = vector.shape_cast %10 : vector<16x16xf32> to vector<1x16x16xf32>
    tpu.vector_store %arg4[%c1_11, %c1_12, %c1_13], %13 {strides = array<i32>} : memref<2x18x18xf32, #tpu.memory_space<vmem>>, vector<1x16x16xf32>,
    %cst_14 = arith.constant 0.000000e+00 : f32
    %14 = vector.broadcast %cst_14 : f32 to vector<16x16xf32>
    %c0_15 = arith.constant 0 : index
    %15 = memref.load %arg1[%c0_15] : memref<18xf32, #tpu.memory_space<smem>>
    %c0_16 = arith.constant 0 : index
    %c0_17 = arith.constant 0 : index
    %c0_18 = arith.constant 0 : index
    %16 = vector.load %arg4[%c0_16, %c0_17, %c0_18] : memref<2x18x18xf32, #tpu.memory_space<vmem>>, vector<1x16x16xf32>
    %17 = vector.shape_cast %16 : vector<1x16x16xf32> to vector<16x16xf32>
    %18 = vector.broadcast %15 : f32 to vector<16x16xf32>
    %19 = arith.mulf %18, %17 : vector<16x16xf32>
    %20 = arith.addf %14, %19 : vector<16x16xf32>
    %c1_19 = arith.constant 1 : index
    %21 = memref.load %arg1[%c1_19] : memref<18xf32, #tpu.memory_space<smem>>
    %c1_20 = arith.constant 1 : index
    %c0_21 = arith.constant 0 : index
    %c0_22 = arith.constant 0 : index
    %22 = vector.load %arg4[%c1_20, %c0_21, %c0_22] : memref<2x18x18xf32, #tpu.memory_space<vmem>>, vector<1x16x16xf32>
    %23 = vector.shape_cast %22 : vector<1x16x16xf32> to vector<16x16xf32>
    %24 = vector.broadcast %21 : f32 to vector<16x16xf32>
    %25 = arith.mulf %24, %23 : vector<16x16xf32>
    %26 = arith.addf %20, %25 : vector<16x16xf32>
    %c2 = arith.constant 2 : index
    %27 = memref.load %arg1[%c2] : memref<18xf32, #tpu.memory_space<smem>>
    %c0_23 = arith.constant 0 : index
    %c0_24 = arith.constant 0 : index
    %c1_25 = arith.constant 1 : index
    %28 = vector.load %arg4[%c0_23, %c0_24, %c1_25] : memref<2x18x18xf32, #tpu.memory_space<vmem>>, vector<1x16x16xf32>
    %29 = vector.shape_cast %28 : vector<1x16x16xf32> to vector<16x16xf32>
    %30 = vector.broadcast %27 : f32 to vector<16x16xf32>
    %31 = arith.mulf %30, %29 : vector<16x16xf32>
    %32 = arith.addf %26, %31 : vector<16x16xf32>
    %c3 = arith.constant 3 : index
    %33 = memref.load %arg1[%c3] : memref<18xf32, #tpu.memory_space<smem>>
    %c1_26 = arith.constant 1 : index
    %c0_27 = arith.constant 0 : index
    %c1_28 = arith.constant 1 : index
    %34 = vector.load %arg4[%c1_26, %c0_27, %c1_28] : memref<2x18x18xf32, #tpu.memory_space<vmem>>, vector<1x16x16xf32>
    %35 = vector.shape_cast %34 : vector<1x16x16xf32> to vector<16x16xf32>
    %36 = vector.broadcast %33 : f32 to vector<16x16xf32>
    %37 = arith.mulf %36, %35 : vector<16x16xf32>
    %38 = arith.addf %32, %37 : vector<16x16xf32>
    %c4 = arith.constant 4 : index
    %39 = memref.load %arg1[%c4] : memref<18xf32, #tpu.memory_space<smem>>
    %c0_29 = arith.constant 0 : index
    %c0_30 = arith.constant 0 : index
    %c2_31 = arith.constant 2 : index
    %40 = vector.load %arg4[%c0_29, %c0_30, %c2_31] : memref<2x18x18xf32, #tpu.memory_space<vmem>>, vector<1x16x16xf32>
    %41 = vector.shape_cast %40 : vector<1x16x16xf32> to vector<16x16xf32>
    %42 = vector.broadcast %39 : f32 to vector<16x16xf32>
    %43 = arith.mulf %42, %41 : vector<16x16xf32>
    %44 = arith.addf %38, %43 : vector<16x16xf32>
    %c5 = arith.constant 5 : index
    %45 = memref.load %arg1[%c5] : memref<18xf32, #tpu.memory_space<smem>>
    %c1_32 = arith.constant 1 : index
    %c0_33 = arith.constant 0 : index
    %c2_34 = arith.constant 2 : index
    %46 = vector.load %arg4[%c1_32, %c0_33, %c2_34] : memref<2x18x18xf32, #tpu.memory_space<vmem>>, vector<1x16x16xf32>
    %47 = vector.shape_cast %46 : vector<1x16x16xf32> to vector<16x16xf32>
    %48 = vector.broadcast %45 : f32 to vector<16x16xf32>
    %49 = arith.mulf %48, %47 : vector<16x16xf32>
    %50 = arith.addf %44, %49 : vector<16x16xf32>
    %c6 = arith.constant 6 : index
    %51 = memref.load %arg1[%c6] : memref<18xf32, #tpu.memory_space<smem>>
    %c0_35 = arith.constant 0 : index
    %c1_36 = arith.constant 1 : index
    %c0_37 = arith.constant 0 : index
    %52 = vector.load %arg4[%c0_35, %c1_36, %c0_37] : memref<2x18x18xf32, #tpu.memory_space<vmem>>, vector<1x16x16xf32>
    %53 = vector.shape_cast %52 : vector<1x16x16xf32> to vector<16x16xf32>
    %54 = vector.broadcast %51 : f32 to vector<16x16xf32>
    %55 = arith.mulf %54, %53 : vector<16x16xf32>
    %56 = arith.addf %50, %55 : vector<16x16xf32>
    %c7 = arith.constant 7 : index
    %57 = memref.load %arg1[%c7] : memref<18xf32, #tpu.memory_space<smem>>
    %c1_38 = arith.constant 1 : index
    %c1_39 = arith.constant 1 : index
    %c0_40 = arith.constant 0 : index
    %58 = vector.load %arg4[%c1_38, %c1_39, %c0_40] : memref<2x18x18xf32, #tpu.memory_space<vmem>>, vector<1x16x16xf32>
    %59 = vector.shape_cast %58 : vector<1x16x16xf32> to vector<16x16xf32>
    %60 = vector.broadcast %57 : f32 to vector<16x16xf32>
    %61 = arith.mulf %60, %59 : vector<16x16xf32>
    %62 = arith.addf %56, %61 : vector<16x16xf32>
    %c8 = arith.constant 8 : index
    %63 = memref.load %arg1[%c8] : memref<18xf32, #tpu.memory_space<smem>>
    %c0_41 = arith.constant 0 : index
    %c1_42 = arith.constant 1 : index
    %c1_43 = arith.constant 1 : index
    %64 = vector.load %arg4[%c0_41, %c1_42, %c1_43] : memref<2x18x18xf32, #tpu.memory_space<vmem>>, vector<1x16x16xf32>
    %65 = vector.shape_cast %64 : vector<1x16x16xf32> to vector<16x16xf32>
    %66 = vector.broadcast %63 : f32 to vector<16x16xf32>
    %67 = arith.mulf %66, %65 : vector<16x16xf32>
    %68 = arith.addf %62, %67 : vector<16x16xf32>
    %c9 = arith.constant 9 : index
    %69 = memref.load %arg1[%c9] : memref<18xf32, #tpu.memory_space<smem>>
    %c1_44 = arith.constant 1 : index
    %c1_45 = arith.constant 1 : index
    %c1_46 = arith.constant 1 : index
    %70 = vector.load %arg4[%c1_44, %c1_45, %c1_46] : memref<2x18x18xf32, #tpu.memory_space<vmem>>, vector<1x16x16xf32>
    %71 = vector.shape_cast %70 : vector<1x16x16xf32> to vector<16x16xf32>
    %72 = vector.broadcast %69 : f32 to vector<16x16xf32>
    %73 = arith.mulf %72, %71 : vector<16x16xf32>
    %74 = arith.addf %68, %73 : vector<16x16xf32>
    %c10 = arith.constant 10 : index
    %75 = memref.load %arg1[%c10] : memref<18xf32, #tpu.memory_space<smem>>
    %c0_47 = arith.constant 0 : index
    %c1_48 = arith.constant 1 : index
    %c2_49 = arith.constant 2 : index
    %76 = vector.load %arg4[%c0_47, %c1_48, %c2_49] : memref<2x18x18xf32, #tpu.memory_space<vmem>>, vector<1x16x16xf32>
    %77 = vector.shape_cast %76 : vector<1x16x16xf32> to vector<16x16xf32>
    %78 = vector.broadcast %75 : f32 to vector<16x16xf32>
    %79 = arith.mulf %78, %77 : vector<16x16xf32>
    %80 = arith.addf %74, %79 : vector<16x16xf32>
    %c11 = arith.constant 11 : index
    %81 = memref.load %arg1[%c11] : memref<18xf32, #tpu.memory_space<smem>>
    %c1_50 = arith.constant 1 : index
    %c1_51 = arith.constant 1 : index
    %c2_52 = arith.constant 2 : index
    %82 = vector.load %arg4[%c1_50, %c1_51, %c2_52] : memref<2x18x18xf32, #tpu.memory_space<vmem>>, vector<1x16x16xf32>
    %83 = vector.shape_cast %82 : vector<1x16x16xf32> to vector<16x16xf32>
    %84 = vector.broadcast %81 : f32 to vector<16x16xf32>
    %85 = arith.mulf %84, %83 : vector<16x16xf32>
    %86 = arith.addf %80, %85 : vector<16x16xf32>
    %c12 = arith.constant 12 : index
    %87 = memref.load %arg1[%c12] : memref<18xf32, #tpu.memory_space<smem>>
    %c0_53 = arith.constant 0 : index
    %c2_54 = arith.constant 2 : index
    %c0_55 = arith.constant 0 : index
    %88 = vector.load %arg4[%c0_53, %c2_54, %c0_55] : memref<2x18x18xf32, #tpu.memory_space<vmem>>, vector<1x16x16xf32>
    %89 = vector.shape_cast %88 : vector<1x16x16xf32> to vector<16x16xf32>
    %90 = vector.broadcast %87 : f32 to vector<16x16xf32>
    %91 = arith.mulf %90, %89 : vector<16x16xf32>
    %92 = arith.addf %86, %91 : vector<16x16xf32>
    %c13 = arith.constant 13 : index
    %93 = memref.load %arg1[%c13] : memref<18xf32, #tpu.memory_space<smem>>
    %c1_56 = arith.constant 1 : index
    %c2_57 = arith.constant 2 : index
    %c0_58 = arith.constant 0 : index
    %94 = vector.load %arg4[%c1_56, %c2_57, %c0_58] : memref<2x18x18xf32, #tpu.memory_space<vmem>>, vector<1x16x16xf32>
    %95 = vector.shape_cast %94 : vector<1x16x16xf32> to vector<16x16xf32>
    %96 = vector.broadcast %93 : f32 to vector<16x16xf32>
    %97 = arith.mulf %96, %95 : vector<16x16xf32>
    %98 = arith.addf %92, %97 : vector<16x16xf32>
    %c14 = arith.constant 14 : index
    %99 = memref.load %arg1[%c14] : memref<18xf32, #tpu.memory_space<smem>>
    %c0_59 = arith.constant 0 : index
    %c2_60 = arith.constant 2 : index
    %c1_61 = arith.constant 1 : index
    %100 = vector.load %arg4[%c0_59, %c2_60, %c1_61] : memref<2x18x18xf32, #tpu.memory_space<vmem>>, vector<1x16x16xf32>
    %101 = vector.shape_cast %100 : vector<1x16x16xf32> to vector<16x16xf32>
    %102 = vector.broadcast %99 : f32 to vector<16x16xf32>
    %103 = arith.mulf %102, %101 : vector<16x16xf32>
    %104 = arith.addf %98, %103 : vector<16x16xf32>
    %c15 = arith.constant 15 : index
    %105 = memref.load %arg1[%c15] : memref<18xf32, #tpu.memory_space<smem>>
    %c1_62 = arith.constant 1 : index
    %c2_63 = arith.constant 2 : index
    %c1_64 = arith.constant 1 : index
    %106 = vector.load %arg4[%c1_62, %c2_63, %c1_64] : memref<2x18x18xf32, #tpu.memory_space<vmem>>, vector<1x16x16xf32>
    %107 = vector.shape_cast %106 : vector<1x16x16xf32> to vector<16x16xf32>
    %108 = vector.broadcast %105 : f32 to vector<16x16xf32>
    %109 = arith.mulf %108, %107 : vector<16x16xf32>
    %110 = arith.addf %104, %109 : vector<16x16xf32>
    %c16 = arith.constant 16 : index
    %111 = memref.load %arg1[%c16] : memref<18xf32, #tpu.memory_space<smem>>
    %c0_65 = arith.constant 0 : index
    %c2_66 = arith.constant 2 : index
    %c2_67 = arith.constant 2 : index
    %112 = vector.load %arg4[%c0_65, %c2_66, %c2_67] : memref<2x18x18xf32, #tpu.memory_space<vmem>>, vector<1x16x16xf32>
    %113 = vector.shape_cast %112 : vector<1x16x16xf32> to vector<16x16xf32>
    %114 = vector.broadcast %111 : f32 to vector<16x16xf32>
    %115 = arith.mulf %114, %113 : vector<16x16xf32>
    %116 = arith.addf %110, %115 : vector<16x16xf32>
    %c17 = arith.constant 17 : index
    %117 = memref.load %arg1[%c17] : memref<18xf32, #tpu.memory_space<smem>>
    %c1_68 = arith.constant 1 : index
    %c2_69 = arith.constant 2 : index
    %c2_70 = arith.constant 2 : index
    %118 = vector.load %arg4[%c1_68, %c2_69, %c2_70] : memref<2x18x18xf32, #tpu.memory_space<vmem>>, vector<1x16x16xf32>
    %119 = vector.shape_cast %118 : vector<1x16x16xf32> to vector<16x16xf32>
    %120 = vector.broadcast %117 : f32 to vector<16x16xf32>
    %121 = arith.mulf %120, %119 : vector<16x16xf32>
    %122 = arith.addf %116, %121 : vector<16x16xf32>
    %cst_71 = arith.constant 0.000000e+00 : f32
    %123 = vector.broadcast %cst_71 : f32 to vector<16x16xf32>
    %124 = arith.subf %123, %122 : vector<16x16xf32>
    %125 = math.exp %124 : vector<16x16xf32>
    %cst_72 = arith.constant 1.000000e+00 : f32
    %126 = vector.broadcast %cst_72 : f32 to vector<16x16xf32>
    %127 = arith.addf %126, %125 : vector<16x16xf32>
    %128 = tpu.reciprocal %127 {approx = true} : vector<16x16xf32> -> vector<16x16xf32>
    %129 = vector.shape_cast %128 : vector<16x16xf32> to vector<1x16x16xf32>
    %130 = vector.broadcast %129 : vector<1x16x16xf32> to vector<16x16x16xf32>
    %131 = arith.mulf %1, %130 : vector<16x16x16xf32>
    %c0_73 = arith.constant 0 : index
    %c0_74 = arith.constant 0 : index
    %c0_75 = arith.constant 0 : index
    %c0_76 = arith.constant 0 : index
    %132 = vector.load %arg3[%c0_73, %c0_74, %c0_75, %c0_76] : memref<1x16x16x16xf32, #tpu.memory_space<vmem>>, vector<1x16x16x16xf32>
    %133 = vector.shape_cast %132 : vector<1x16x16x16xf32> to vector<16x16x16xf32>
    %134 = vector.shape_cast %131 : vector<16x16x16xf32> to vector<1x16x16x16xf32>
    tpu.vector_store %arg3[%c0_73, %c0_74, %c0_75, %c0_76], %134 {strides = array<i32>} : memref<1x16x16x16xf32, #tpu.memory_space<vmem>>, vector<1x16x16x16xf32>,
    return
  }
  func.func @transform_0(%arg0: i32) -> i32 {
    %c0_i32 = arith.constant 0 : i32
    %c0_i32_0 = arith.constant 0 : i32
    return %c0_i32 : i32
  }
  func.func @transform_1(%arg0: i32) -> (i32, i32, i32, i32) {
    %c0_i32 = arith.constant 0 : i32
    %c0_i32_0 = arith.constant 0 : i32
    %c0_i32_1 = arith.constant 0 : i32
    %c0_i32_2 = arith.constant 0 : i32
    return %arg0, %c0_i32, %c0_i32_0, %c0_i32_1 : i32, i32, i32, i32
  }
  func.func @transform_2(%arg0: i32) -> (i32, i32, i32, i32) {
    %c0_i32 = arith.constant 0 : i32
    %c0_i32_0 = arith.constant 0 : i32
    %c0_i32_1 = arith.constant 0 : i32
    %c0_i32_2 = arith.constant 0 : i32
    return %arg0, %c0_i32, %c0_i32_0, %c0_i32_1 : i32, i32, i32, i32
  }
}

</mosaic_0001>

<llo_original>
// kernel: tpu_custom_call.1
$region0: #{tpu_custom_call.1}
  #allocation0 [shape = 'u32[]', space=smem, size = 0x4, offset = 0x4, fixed_abs, tag = 'smem constant byte address 0x4 - core index']
  #allocation1 [shape = 'u32[144,128]{1,0:T(1,128)}', space=vmem, size = 0x12000, scoped, tag = 'internal scratch']
  #allocation2 [shape = 'f32[2,18,18]{2,1,0:T(8,128)}', space=vmem, size = 0x6000, scoped, tag = 'scratch operand']
  %s0 = inlined_call_operand.hbm [shape: f32[18], index: 0, kind: input, shape index: {}]
  %s1 = inlined_call_operand.hbm [shape: f32[2,16,16,16], index: 1, kind: input, shape index: {}]
  %s2 = inlined_call_operand.hbm [shape: f32[2,16,16,16], index: 2, kind: output, shape index: {}]
  %s3 = sld [smem:[#allocation0]]
  $region49: #{tpu_custom_call.1} parent=0
    _
  %s5 = ssub.s32 1, %s3
  %s6 = scalar_select 0, %s5, %s3
  $region1: #{tpu_custom_call.1} parent=0
    #allocation3 [shape = 'u8[512]{0}', space=smem, size = 0x200, scoped, tag = 'input window, operand 0, single buffered']
    #allocation4 [shape = 's32[2]{0}', space=sflag, size = 0x8, scoped, tag = 'scoped memory for tpu_custom_call.1']
    #allocation5 [shape = 's32[2]{0}', space=sflag, size = 0x8, scoped, tag = 'scoped memory for tpu_custom_call.1']
    #allocation6 [shape = 's32[2]{0}', space=sflag, size = 0x8, scoped, tag = 'scoped memory for tpu_custom_call.1']
    #allocation7 [shape = 'u8[262144]{0}', space=vmem, size = 0x40000, scoped, tag = 'input window, operand 1']
    #allocation8 [shape = 'u8[262144]{0}', space=vmem, size = 0x40000, scoped, tag = 'output window, operand 0']
    %7 = vsyncpa [#allocation6], 0
    %8 = vsyncpa [#allocation4], 0
    %s9 = scalar_lea.sflag [#allocation4], 1
    %10 = vsyncpa %s9, 0
    %11 = vsyncpa [#allocation5], 0
    %s12 = scalar_lea.sflag [#allocation5], 1
    %13 = vsyncpa %s12, 0
    loop: start=0, step=1, limit=4
    $region2: #{tpu_custom_call.1} parent=1 // loop_pre_header
      _
    $region3: #{tpu_custom_call.1} parent=1 // loop_header
      %s15 = sphi 0, %s19
      %p16 = scmp.ge.s32.totalorder %s15, 4
      %s23 = sphi 0, %s23
      %s25 = sphi 0, %s23
      %s26 = sphi 0, %s25
      %s40 = sphi 0, %s26
      %s46 = sphi 0, %s48
      %s49 = sphi 0, %s46
      %s50 = sphi 0, %s49
      %s66 = sphi 0, %s50
      %s72 = sphi 0, %s74
      %s75 = sphi 0, %s72
      %s76 = sphi 0, %s75
      %s92 = sphi 0, %s76
    $region4: #{tpu_custom_call.1} parent=1 // loop_header_branch
      %18 = sbr.rel (%p16) target = $region8
    $region5: #{tpu_custom_call.1} parent=1 // loop_body
      %s20 = ssub.s32 %s15, 1
      %s21 = ssub.s32 %s15, 2
      %s22 = sadd.s32 %s15, 1
      %s24 = sadd.s32 %s23, 1
      %p27 = scmp.eq.s32.totalorder %s15, 1
      %p28 = scmp.ne.s32.totalorder %s23, %s25
      %p29 = scmp.eq.s32.totalorder %s15, 0
      %p30 = por %p28, %p29
      %p31 = scmp.ne.s32.totalorder %s23, %s25
      %p32 = scmp.eq.s32.totalorder %s20, 1
      %p33 = por %p31, %p32
      %p34 = scmp.ne.s32.totalorder %s25, %s26
      %p35 = scmp.eq.s32.totalorder %s20, 0
      %p36 = por %p34, %p35
      %p37 = scmp.ne.s32.totalorder %s25, %s26
      %p38 = scmp.eq.s32.totalorder %s21, 1
      %p39 = por %p37, %p38
      %p41 = scmp.ne.s32.totalorder %s26, %s40
      %p42 = scmp.eq.s32.totalorder %s21, 0
      %p43 = por %p41, %p42
      %s44 = ssub.s32 %s15, %s22
      %p45 = scmp.eq.s32.totalorder %s44, 0
      %s47 = sadd.s32 %s46, 1
      %s48 = scalar_select %p45, %s46, %s47
      %p51 = pneg %p45
      %p52 = scmp.eq.s32.totalorder %s15, 1
      %p53 = por %p51, %p52
      %p54 = scmp.ne.s32.totalorder %s46, %s49
      %p55 = scmp.eq.s32.totalorder %s15, 0
      %p56 = por %p54, %p55
      %p57 = scmp.ne.s32.totalorder %s46, %s49
      %p58 = scmp.eq.s32.totalorder %s20, 1
      %p59 = por %p57, %p58
      %p60 = scmp.ne.s32.totalorder %s49, %s50
      %p61 = scmp.eq.s32.totalorder %s20, 0
      %p62 = por %p60, %p61
      %p63 = scmp.ne.s32.totalorder %s49, %s50
      %p64 = scmp.eq.s32.totalorder %s21, 1
      %p65 = por %p63, %p64
      %p67 = scmp.ne.s32.totalorder %s50, %s66
      %p68 = scmp.eq.s32.totalorder %s21, 0
      %p69 = por %p67, %p68
      %s70 = ssub.s32 %s15, %s22
      %p71 = scmp.eq.s32.totalorder %s70, 0
      %s73 = sadd.s32 %s72, 1
      %s74 = scalar_select %p71, %s72, %s73
      %p77 = pneg %p71
      %p78 = scmp.eq.s32.totalorder %s15, 1
      %p79 = por %p77, %p78
      %p80 = scmp.ne.s32.totalorder %s72, %s75
      %p81 = scmp.eq.s32.totalorder %s15, 0
      %p82 = por %p80, %p81
      %p83 = scmp.ne.s32.totalorder %s72, %s75
      %p84 = scmp.eq.s32.totalorder %s20, 1
      %p85 = por %p83, %p84
      %p86 = scmp.ne.s32.totalorder %s75, %s76
      %p87 = scmp.eq.s32.totalorder %s20, 0
      %p88 = por %p86, %p87
      %p89 = scmp.ne.s32.totalorder %s75, %s76
      %p90 = scmp.eq.s32.totalorder %s21, 1
      %p91 = por %p89, %p90
      %p93 = scmp.ne.s32.totalorder %s76, %s92
      %p94 = scmp.eq.s32.totalorder %s21, 0
      %p95 = por %p93, %p94
      %p96 = scmp.le.s32.totalorder 1, %s15
      %p97 = scmp.lt.s32.totalorder %s15, 3
      %p98 = pnand %p96, %p97
      %p99 = pneg %p98
      // Predicated region
      $region9: #{tpu_custom_call.1} parent=5 // pred_check
        _
      $region10: #{tpu_custom_call.1} parent=5 // pred_check_branch
        %101 = sbr.rel (%p98) target = $region12
      $region11: #{tpu_custom_call.1} parent=5 // pred_region
        %s102 = ssub.s32 %s15, 1
        // Predicated region
        $region13: #{tpu_custom_call.1} parent=11 // pred_check
          %p103 = pneg %p36
        $region14: #{tpu_custom_call.1} parent=11 // pred_check_branch
          %105 = sbr.rel (%p103) target = $region16
        $region15: #{tpu_custom_call.1} parent=11 // pred_region
          %s107 = ssub.s32 16, 16
          %108 = vsyncadd [#allocation6], %s107
          %111 = dma.hbm_to_smem %s0, 16, [#allocation3], [#allocation6]
        $region16: #{tpu_custom_call.1} parent=11 // pred_fallthru
          _
      $region12: #{tpu_custom_call.1} parent=5 // pred_fallthru
        _
      %p112 = scmp.lt.s32.totalorder %s15, 2
      // Predicated region
      $region17: #{tpu_custom_call.1} parent=5 // pred_check
        %p113 = pneg %p112
      $region18: #{tpu_custom_call.1} parent=5 // pred_check_branch
        %115 = sbr.rel (%p113) target = $region20
      $region19: #{tpu_custom_call.1} parent=5 // pred_region
        // Predicated region
        $region21: #{tpu_custom_call.1} parent=19 // pred_check
          %p116 = pneg %p56
        $region22: #{tpu_custom_call.1} parent=19 // pred_check_branch
          %118 = sbr.rel (%p116) target = $region24
        $region23: #{tpu_custom_call.1} parent=19 // pred_region
          %s119 = sand.u32 %s46, 1
          %s120 = scalar_lea.sflag [#allocation4], %s119
          %s121 = sand.u32 %s46, 1
          %s122 = smul.addr %s121, 256
          %s123 = scalar_lea.vmem [#allocation7], %s122
          %s125 = ssub.s32 4096, 4096
          %126 = vsyncadd %s120, %s125
          %s127 = smul.addr %s15, 32
          %s128 = smul.addr %s127, 128
          %s129 = scalar_lea.hbm %s1, %s128
          %s130 = sshll.u32 %s123, 4
          %s131 = int_to_ptr.vmem [resolvable:$true] %s130
          %136 = dma.hbm_to_vmem [thread:$0]  %s129, 4096, %s131, %s120, 128, 128, 8
        $region24: #{tpu_custom_call.1} parent=19 // pred_fallthru
          _
      $region20: #{tpu_custom_call.1} parent=5 // pred_fallthru
        _
      %p137 = scmp.le.s32.totalorder 1, %s15
      %p138 = scmp.lt.s32.totalorder %s15, 3
      %p139 = pnand %p137, %p138
      %p140 = pneg %p139
      // Predicated region
      $region25: #{tpu_custom_call.1} parent=5 // pred_check
        _
      $region26: #{tpu_custom_call.1} parent=5 // pred_check_branch
        %142 = sbr.rel (%p139) target = $region28
      $region27: #{tpu_custom_call.1} parent=5 // pred_region
        %s143 = ssub.s32 %s15, 1
        // Predicated region
        $region29: #{tpu_custom_call.1} parent=27 // pred_check
          %p144 = pneg %p36
        $region30: #{tpu_custom_call.1} parent=27 // pred_check_branch
          %146 = sbr.rel (%p144) target = $region32
        $region31: #{tpu_custom_call.1} parent=27 // pred_region
          %147 = dma.done [#allocation6], 16
        $region32: #{tpu_custom_call.1} parent=27 // pred_fallthru
          _
        %s148 = sand.u32 %s49, 1
        %s149 = scalar_lea.sflag [#allocation4], %s148
        %s150 = sand.u32 %s49, 1
        %s151 = smul.addr %s150, 256
        %s152 = scalar_lea.vmem [#allocation7], %s151
        // Predicated region
        $region33: #{tpu_custom_call.1} parent=27 // pred_check
          %p153 = pneg %p62
        $region34: #{tpu_custom_call.1} parent=27 // pred_check_branch
          %155 = sbr.rel (%p153) target = $region36
        $region35: #{tpu_custom_call.1} parent=27 // pred_region
          %156 = dma.done %s149, 4096
        $region36: #{tpu_custom_call.1} parent=27 // pred_fallthru
          _
        %157 = sfence
        %p158 = pneg %p36
        %p159 = pneg %p33
        %s160 = sand.u32 %s49, 1
        %s161 = scalar_lea.sflag [#allocation4], %s160
        %s162 = sand.u32 %s49, 1
        %s163 = smul.addr %s162, 256
        %s164 = scalar_lea.vmem [#allocation7], %s163
        %p165 = pneg %p62
        %p166 = pneg %p59
        %p167 = pneg %p88
        %p168 = pneg %p85
        %s169 = sand.u32 %s75, 1
        %s170 = scalar_lea.sflag [#allocation5], %s169
        %s171 = sand.u32 %s75, 1
        %s172 = smul.addr %s171, 256
        %s173 = scalar_lea.vmem [#allocation8], %s172
        %v174 = vld [vmem:[%s152] sm:$0xff]
        %v175 = vld [vmem:[%s152 + $0x8] sm:$0xff]
        %v176 = vld [vmem:[%s152 + $0x10] sm:$0xff]
        %v177 = vld [vmem:[%s152 + $0x18] sm:$0xff]
        %v178 = vld [vmem:[%s152 + $0x20] sm:$0xff]
        %v179 = vld [vmem:[%s152 + $0x28] sm:$0xff]
        %v180 = vld [vmem:[%s152 + $0x30] sm:$0xff]
        %v181 = vld [vmem:[%s152 + $0x38] sm:$0xff]
        %v182 = vld [vmem:[%s152 + $0x40] sm:$0xff]
        %v183 = vld [vmem:[%s152 + $0x48] sm:$0xff]
        %v184 = vld [vmem:[%s152 + $0x50] sm:$0xff]
        %v185 = vld [vmem:[%s152 + $0x58] sm:$0xff]
        %v186 = vld [vmem:[%s152 + $0x60] sm:$0xff]
        %v187 = vld [vmem:[%s152 + $0x68] sm:$0xff]
        %v188 = vld [vmem:[%s152 + $0x70] sm:$0xff]
        %v189 = vld [vmem:[%s152 + $0x78] sm:$0xff]
        %v190 = vld [vmem:[%s152 + $0x80] sm:$0xff]
        %v191 = vld [vmem:[%s152 + $0x88] sm:$0xff]
        %v192 = vld [vmem:[%s152 + $0x90] sm:$0xff]
        %v193 = vld [vmem:[%s152 + $0x98] sm:$0xff]
        %v194 = vld [vmem:[%s152 + $0xa0] sm:$0xff]
        %v195 = vld [vmem:[%s152 + $0xa8] sm:$0xff]
        %v196 = vld [vmem:[%s152 + $0xb0] sm:$0xff]
        %v197 = vld [vmem:[%s152 + $0xb8] sm:$0xff]
        %v198 = vld [vmem:[%s152 + $0xc0] sm:$0xff]
        %v199 = vld [vmem:[%s152 + $0xc8] sm:$0xff]
        %v200 = vld [vmem:[%s152 + $0xd0] sm:$0xff]
        %v201 = vld [vmem:[%s152 + $0xd8] sm:$0xff]
        %v202 = vld [vmem:[%s152 + $0xe0] sm:$0xff]
        %v203 = vld [vmem:[%s152 + $0xe8] sm:$0xff]
        %v204 = vld [vmem:[%s152 + $0xf0] sm:$0xff]
        %v205 = vld [vmem:[%s152 + $0xf8] sm:$0xff]
        %vm206 = vcmask 146432
        %207 = vst.msk [vmem:[#allocation2] sm:$0xff] %vm206, 0.0
        %208 = vst.msk [vmem:[#allocation2 + $0x8] sm:$0xff] %vm206, 0.0
        %vm209 = vcmask 140288
        %210 = vst.msk [vmem:[#allocation2 + $0x10] sm:$0x3] %vm209, 0.0
        %211 = vst.msk [vmem:[#allocation2 + $0x18] sm:$0xff] %vm206, 0.0
        %212 = vst.msk [vmem:[#allocation2 + $0x20] sm:$0xff] %vm206, 0.0
        %213 = vst.msk [vmem:[#allocation2 + $0x28] sm:$0x3] %vm209, 0.0
        %vm214 = vcmask 130048
        %v215 = vsel %vm214, %v174, -inf
        %v216 = vsel %vm214, %v176, -inf
        %v217 = vsel %vm214, %v178, -inf
        %v218 = vmax.f32 %v215, %v217
        %v219 = vsel %vm214, %v180, -inf
        %v220 = vmax.f32 %v216, %v219
        %v221 = vsel %vm214, %v182, -inf
        %v222 = vmax.f32 %v218, %v221
        %v223 = vsel %vm214, %v184, -inf
        %v224 = vmax.f32 %v220, %v223
        %v225 = vsel %vm214, %v186, -inf
        %v226 = vmax.f32 %v222, %v225
        %v227 = vsel %vm214, %v188, -inf
        %v228 = vmax.f32 %v224, %v227
        %v229 = vsel %vm214, %v190, -inf
        %v230 = vmax.f32 %v226, %v229
        %v231 = vsel %vm214, %v192, -inf
        %v232 = vmax.f32 %v228, %v231
        %v233 = vsel %vm214, %v194, -inf
        %v234 = vmax.f32 %v230, %v233
        %v235 = vsel %vm214, %v196, -inf
        %v236 = vmax.f32 %v232, %v235
        %v237 = vsel %vm214, %v198, -inf
        %v238 = vmax.f32 %v234, %v237
        %v239 = vsel %vm214, %v200, -inf
        %v240 = vmax.f32 %v236, %v239
        %v241 = vsel %vm214, %v202, -inf
        %v242 = vmax.f32 %v238, %v241
        %v243 = vsel %vm214, %v204, -inf
        %v244 = vmax.f32 %v240, %v243
        %v245 = vmax.f32 %v242, %v244
        %v246 = vsel %vm214, %v175, -inf
        %v247 = vsel %vm214, %v177, -inf
        %v248 = vsel %vm214, %v179, -inf
        %v249 = vmax.f32 %v246, %v248
        %v250 = vsel %vm214, %v181, -inf
        %v251 = vmax.f32 %v247, %v250
        %v252 = vsel %vm214, %v183, -inf
        %v253 = vmax.f32 %v249, %v252
        %v254 = vsel %vm214, %v185, -inf
        %v255 = vmax.f32 %v251, %v254
        %v256 = vsel %vm214, %v187, -inf
        %v257 = vmax.f32 %v253, %v256
        %v258 = vsel %vm214, %v189, -inf
        %v259 = vmax.f32 %v255, %v258
        %v260 = vsel %vm214, %v191, -inf
        %v261 = vmax.f32 %v257, %v260
        %v262 = vsel %vm214, %v193, -inf
        %v263 = vmax.f32 %v259, %v262
        %v264 = vsel %vm214, %v195, -inf
        %v265 = vmax.f32 %v261, %v264
        %v266 = vsel %vm214, %v197, -inf
        %v267 = vmax.f32 %v263, %v266
        %v268 = vsel %vm214, %v199, -inf
        %v269 = vmax.f32 %v265, %v268
        %v270 = vsel %vm214, %v201, -inf
        %v271 = vmax.f32 %v267, %v270
        %v272 = vsel %vm214, %v203, -inf
        %v273 = vmax.f32 %v269, %v272
        %v274 = vsel %vm214, %v205, -inf
        %v275 = vmax.f32 %v271, %v274
        %v276 = vmax.f32 %v273, %v275
        %279 = vrot.lane.b32.xlu0 %v245, 1
        %v280 = vpop.permute.xlu0 %279
        %281 = vrot.lane.b32.xlu0 %v276, 1
        %v282 = vpop.permute.xlu0 %281
        %vm285 = vcmask 138248
        %286 = vst.msk [vmem:[#allocation2 + $0x1] sm:$0xff] %vm285, %v280
        %287 = vst.msk [vmem:[#allocation2 + $0x9] sm:$0xff] %vm285, %v282
        %v288 = vsel %vm214, %v174, 0.0
        %v289 = vsel %vm214, %v176, 0.0
        %v290 = vadd.f32 %v288, %v289
        %v291 = vsel %vm214, %v178, 0.0
        %v292 = vadd.f32 %v290, %v291
        %v293 = vsel %vm214, %v180, 0.0
        %v294 = vadd.f32 %v292, %v293
        %v295 = vsel %vm214, %v182, 0.0
        %v296 = vadd.f32 %v294, %v295
        %v297 = vsel %vm214, %v184, 0.0
        %v298 = vadd.f32 %v296, %v297
        %v299 = vsel %vm214, %v186, 0.0
        %v300 = vadd.f32 %v298, %v299
        %v301 = vsel %vm214, %v188, 0.0
        %v302 = vadd.f32 %v300, %v301
        %v303 = vsel %vm214, %v190, 0.0
        %v304 = vadd.f32 %v302, %v303
        %v305 = vsel %vm214, %v192, 0.0
        %v306 = vadd.f32 %v304, %v305
        %v307 = vsel %vm214, %v194, 0.0
        %v308 = vadd.f32 %v306, %v307
        %v309 = vsel %vm214, %v196, 0.0
        %v310 = vadd.f32 %v308, %v309
        %v311 = vsel %vm214, %v198, 0.0
        %v312 = vadd.f32 %v310, %v311
        %v313 = vsel %vm214, %v200, 0.0
        %v314 = vadd.f32 %v312, %v313
        %v315 = vsel %vm214, %v202, 0.0
        %v316 = vadd.f32 %v314, %v315
        %v317 = vsel %vm214, %v204, 0.0
        %v318 = vadd.f32 %v316, %v317
        %v319 = vsel %vm214, %v175, 0.0
        %v320 = vsel %vm214, %v177, 0.0
        %v321 = vadd.f32 %v319, %v320
        %v322 = vsel %vm214, %v179, 0.0
        %v323 = vadd.f32 %v321, %v322
        %v324 = vsel %vm214, %v181, 0.0
        %v325 = vadd.f32 %v323, %v324
        %v326 = vsel %vm214, %v183, 0.0
        %v327 = vadd.f32 %v325, %v326
        %v328 = vsel %vm214, %v185, 0.0
        %v329 = vadd.f32 %v327, %v328
        %v330 = vsel %vm214, %v187, 0.0
        %v331 = vadd.f32 %v329, %v330
        %v332 = vsel %vm214, %v189, 0.0
        %v333 = vadd.f32 %v331, %v332
        %v334 = vsel %vm214, %v191, 0.0
        %v335 = vadd.f32 %v333, %v334
        %v336 = vsel %vm214, %v193, 0.0
        %v337 = vadd.f32 %v335, %v336
        %v338 = vsel %vm214, %v195, 0.0
        %v339 = vadd.f32 %v337, %v338
        %v340 = vsel %vm214, %v197, 0.0
        %v341 = vadd.f32 %v339, %v340
        %v342 = vsel %vm214, %v199, 0.0
        %v343 = vadd.f32 %v341, %v342
        %v344 = vsel %vm214, %v201, 0.0
        %v345 = vadd.f32 %v343, %v344
        %v346 = vsel %vm214, %v203, 0.0
        %v347 = vadd.f32 %v345, %v346
        %v348 = vsel %vm214, %v205, 0.0
        %v349 = vadd.f32 %v347, %v348
        %v350 = vrcp.pop 16.0
        %v351 = vmul.f32 %v318, %v350
        %v352 = vmul.f32 %v349, %v350
        %355 = vrot.lane.b32.xlu0 %v351, 1
        %v356 = vpop.permute.xlu0 %355
        %357 = vrot.lane.b32.xlu0 %v352, 1
        %v358 = vpop.permute.xlu0 %357
        %s361 = scalar_lea.vmem [#allocation2], 24
        %362 = vst.msk [vmem:[%s361 + $0x1] sm:$0xff] %vm285, %v356
        %363 = vst.msk [vmem:[%s361 + $0x9] sm:$0xff] %vm285, %v358
        %s364 = sld [smem:[#allocation3]]
        %v365 = vld [vmem:[#allocation2] sm:$0xff]
        %v366 = vld [vmem:[#allocation2 + $0x8] sm:$0xff]
        %v367 = vstv %s364
        %v368 = vmul.f32 %v367, %v365
        %v369 = vmul.f32 %v367, %v366
        %v370 = vadd.f32 %v368, 0.0
        %v371 = vadd.f32 %v369, 0.0
        %s372 = sld [smem:[#allocation3 + $0x1]]
        %v373 = vld [vmem:[%s361] sm:$0xff]
        %v374 = vld [vmem:[%s361 + $0x8] sm:$0xff]
        %v375 = vstv %s372
        %v376 = vmul.f32 %v375, %v373
        %v377 = vmul.f32 %v375, %v374
        %v378 = vadd.f32 %v370, %v376
        %v379 = vadd.f32 %v371, %v377
        %s380 = sld [smem:[#allocation3 + $0x2]]
        %v381 = vstv %s380
        %v382 = vmul.f32 %v381, %v365
        %v383 = vmul.f32 %v381, %v366
        %386 = vrot.lane.b32.xlu0 %v382, 127
        %v387 = vpop.permute.xlu0 %386
        %388 = vrot.lane.b32.xlu0 %v383, 127
        %v389 = vpop.permute.xlu0 %388
        %v392 = vadd.f32 %v378, %v387
        %v393 = vadd.f32 %v379, %v389
        %s394 = sld [smem:[#allocation3 + $0x3]]
        %v395 = vstv %s394
        %v396 = vmul.f32 %v395, %v373
        %v397 = vmul.f32 %v395, %v374
        %400 = vrot.lane.b32.xlu0 %v396, 127
        %v401 = vpop.permute.xlu0 %400
        %402 = vrot.lane.b32.xlu0 %v397, 127
        %v403 = vpop.permute.xlu0 %402
        %v406 = vadd.f32 %v392, %v401
        %v407 = vadd.f32 %v393, %v403
        %s408 = sld [smem:[#allocation3 + $0x4]]
        %v409 = vstv %s408
        %v410 = vmul.f32 %v409, %v365
        %v411 = vmul.f32 %v409, %v366
        %414 = vrot.lane.b32.xlu0 %v410, 126
        %v415 = vpop.permute.xlu0 %414
        %416 = vrot.lane.b32.xlu0 %v411, 126
        %v417 = vpop.permute.xlu0 %416
        %v420 = vadd.f32 %v406, %v415
        %v421 = vadd.f32 %v407, %v417
        %s422 = sld [smem:[#allocation3 + $0x5]]
        %v423 = vstv %s422
        %v424 = vmul.f32 %v423, %v373
        %v425 = vmul.f32 %v423, %v374
        %428 = vrot.lane.b32.xlu0 %v424, 126
        %v429 = vpop.permute.xlu0 %428
        %430 = vrot.lane.b32.xlu0 %v425, 126
        %v431 = vpop.permute.xlu0 %430
        %v434 = vadd.f32 %v420, %v429
        %v435 = vadd.f32 %v421, %v431
        %s436 = sld [smem:[#allocation3 + $0x6]]
        %v437 = vld [vmem:[#allocation2 + $0x1] sm:$0xff]
        %v438 = vld [vmem:[#allocation2 + $0x9] sm:$0xff]
        %v439 = vstv %s436
        %v440 = vmul.f32 %v439, %v437
        %v441 = vmul.f32 %v439, %v438
        %v442 = vadd.f32 %v434, %v440
        %v443 = vadd.f32 %v435, %v441
        %s444 = sld [smem:[#allocation3 + $0x7]]
        %v445 = vld [vmem:[%s361 + $0x1] sm:$0xff]
        %v446 = vld [vmem:[%s361 + $0x9] sm:$0xff]
        %v447 = vstv %s444
        %v448 = vmul.f32 %v447, %v445
        %v449 = vmul.f32 %v447, %v446
        %v450 = vadd.f32 %v442, %v448
        %v451 = vadd.f32 %v443, %v449
        %s452 = sld [smem:[#allocation3 + $0x8]]
        %v453 = vstv %s452
        %v454 = vmul.f32 %v453, %v437
        %v455 = vmul.f32 %v453, %v438
        %458 = vrot.lane.b32.xlu0 %v454, 127
        %v459 = vpop.permute.xlu0 %458
        %460 = vrot.lane.b32.xlu0 %v455, 127
        %v461 = vpop.permute.xlu0 %460
        %v464 = vadd.f32 %v450, %v459
        %v465 = vadd.f32 %v451, %v461
        %s466 = sld [smem:[#allocation3 + $0x9]]
        %v467 = vstv %s466
        %v468 = vmul.f32 %v467, %v445
        %v469 = vmul.f32 %v467, %v446
        %472 = vrot.lane.b32.xlu0 %v468, 127
        %v473 = vpop.permute.xlu0 %472
        %474 = vrot.lane.b32.xlu0 %v469, 127
        %v475 = vpop.permute.xlu0 %474
        %v478 = vadd.f32 %v464, %v473
        %v479 = vadd.f32 %v465, %v475
        %s480 = sld [smem:[#allocation3 + $0xa]]
        %v481 = vstv %s480
        %v482 = vmul.f32 %v481, %v437
        %v483 = vmul.f32 %v481, %v438
        %486 = vrot.lane.b32.xlu0 %v482, 126
        %v487 = vpop.permute.xlu0 %486
        %488 = vrot.lane.b32.xlu0 %v483, 126
        %v489 = vpop.permute.xlu0 %488
        %v492 = vadd.f32 %v478, %v487
        %v493 = vadd.f32 %v479, %v489
        %s494 = sld [smem:[#allocation3 + $0xb]]
        %v495 = vstv %s494
        %v496 = vmul.f32 %v495, %v445
        %v497 = vmul.f32 %v495, %v446
        %500 = vrot.lane.b32.xlu0 %v496, 126
        %v501 = vpop.permute.xlu0 %500
        %502 = vrot.lane.b32.xlu0 %v497, 126
        %v503 = vpop.permute.xlu0 %502
        %v506 = vadd.f32 %v492, %v501
        %v507 = vadd.f32 %v493, %v503
        %s508 = sld [smem:[#allocation3 + $0xc]]
        %v509 = vld [vmem:[#allocation2 + $0x2] sm:$0xff]
        %v510 = vld [vmem:[#allocation2 + $0xa] sm:$0xff]
        %v511 = vstv %s508
        %v512 = vmul.f32 %v511, %v509
        %v513 = vmul.f32 %v511, %v510
        %v514 = vadd.f32 %v506, %v512
        %v515 = vadd.f32 %v507, %v513
        %s516 = sld [smem:[#allocation3 + $0xd]]
        %v517 = vld [vmem:[%s361 + $0x2] sm:$0xff]
        %v518 = vld [vmem:[%s361 + $0xa] sm:$0xff]
        %v519 = vstv %s516
        %v520 = vmul.f32 %v519, %v517
        %v521 = vmul.f32 %v519, %v518
        %v522 = vadd.f32 %v514, %v520
        %v523 = vadd.f32 %v515, %v521
        %s524 = sld [smem:[#allocation3 + $0xe]]
        %v525 = vstv %s524
        %v526 = vmul.f32 %v525, %v509
        %v527 = vmul.f32 %v525, %v510
        %530 = vrot.lane.b32.xlu0 %v526, 127
        %v531 = vpop.permute.xlu0 %530
        %532 = vrot.lane.b32.xlu0 %v527, 127
        %v533 = vpop.permute.xlu0 %532
        %v536 = vadd.f32 %v522, %v531
        %v537 = vadd.f32 %v523, %v533
        %s538 = sld [smem:[#allocation3 + $0xf]]
        %v539 = vstv %s538
        %v540 = vmul.f32 %v539, %v517
        %v541 = vmul.f32 %v539, %v518
        %544 = vrot.lane.b32.xlu0 %v540, 127
        %v545 = vpop.permute.xlu0 %544
        %546 = vrot.lane.b32.xlu0 %v541, 127
        %v547 = vpop.permute.xlu0 %546
        %v550 = vadd.f32 %v536, %v545
        %v551 = vadd.f32 %v537, %v547
        %s552 = sld [smem:[#allocation3 + $0x10]]
        %v553 = vstv %s552
        %v554 = vmul.f32 %v553, %v509
        %v555 = vmul.f32 %v553, %v510
        %558 = vrot.lane.b32.xlu0 %v554, 126
        %v559 = vpop.permute.xlu0 %558
        %560 = vrot.lane.b32.xlu0 %v555, 126
        %v561 = vpop.permute.xlu0 %560
        %v564 = vadd.f32 %v550, %v559
        %v565 = vadd.f32 %v551, %v561
        %s566 = sld [smem:[#allocation3 + $0x11]]
        %v567 = vstv %s566
        %v568 = vmul.f32 %v567, %v517
        %v569 = vmul.f32 %v567, %v518
        %572 = vrot.lane.b32.xlu0 %v568, 126
        %v573 = vpop.permute.xlu0 %572
        %574 = vrot.lane.b32.xlu0 %v569, 126
        %v575 = vpop.permute.xlu0 %574
        %v578 = vadd.f32 %v564, %v573
        %v579 = vadd.f32 %v565, %v575
        %v580 = vsub.f32 0.0, %v578
        %v581 = vsub.f32 0.0, %v579
        %v582 = vmul.f32 %v580, 1.442695
        %v583 = vpow.pop %v582
        %v584 = vmul.f32 %v581, 1.442695
        %v585 = vpow.pop %v584
        %v586 = vadd.f32 %v583, 1.0
        %v587 = vadd.f32 %v585, 1.0
        %v588 = vrcp.pop %v586
        %v589 = vrcp.pop %v587
        %v590 = vmul.f32 %v174, %v588
        %v591 = vmul.f32 %v175, %v589
        %v592 = vmul.f32 %v176, %v588
        %v593 = vmul.f32 %v177, %v589
        %v594 = vmul.f32 %v178, %v588
        %v595 = vmul.f32 %v179, %v589
        %v596 = vmul.f32 %v180, %v588
        %v597 = vmul.f32 %v181, %v589
        %v598 = vmul.f32 %v182, %v588
        %v599 = vmul.f32 %v183, %v589
        %v600 = vmul.f32 %v184, %v588
        %v601 = vmul.f32 %v185, %v589
        %v602 = vmul.f32 %v186, %v588
        %v603 = vmul.f32 %v187, %v589
        %v604 = vmul.f32 %v188, %v588
        %v605 = vmul.f32 %v189, %v589
        %v606 = vmul.f32 %v190, %v588
        %v607 = vmul.f32 %v191, %v589
        %v608 = vmul.f32 %v192, %v588
        %v609 = vmul.f32 %v193, %v589
        %v610 = vmul.f32 %v194, %v588
        %v611 = vmul.f32 %v195, %v589
        %v612 = vmul.f32 %v196, %v588
        %v613 = vmul.f32 %v197, %v589
        %v614 = vmul.f32 %v198, %v588
        %v615 = vmul.f32 %v199, %v589
        %v616 = vmul.f32 %v200, %v588
        %v617 = vmul.f32 %v201, %v589
        %v618 = vmul.f32 %v202, %v588
        %v619 = vmul.f32 %v203, %v589
        %v620 = vmul.f32 %v204, %v588
        %v621 = vmul.f32 %v205, %v589
        %622 = vst.msk [vmem:[%s173] sm:$0xff] %vm214, %v590
        %623 = vst.msk [vmem:[%s173 + $0x8] sm:$0xff] %vm214, %v591
        %624 = vst.msk [vmem:[%s173 + $0x10] sm:$0xff] %vm214, %v592
        %625 = vst.msk [vmem:[%s173 + $0x18] sm:$0xff] %vm214, %v593
        %626 = vst.msk [vmem:[%s173 + $0x20] sm:$0xff] %vm214, %v594
        %627 = vst.msk [vmem:[%s173 + $0x28] sm:$0xff] %vm214, %v595
        %628 = vst.msk [vmem:[%s173 + $0x30] sm:$0xff] %vm214, %v596
        %629 = vst.msk [vmem:[%s173 + $0x38] sm:$0xff] %vm214, %v597
        %630 = vst.msk [vmem:[%s173 + $0x40] sm:$0xff] %vm214, %v598
        %631 = vst.msk [vmem:[%s173 + $0x48] sm:$0xff] %vm214, %v599
        %632 = vst.msk [vmem:[%s173 + $0x50] sm:$0xff] %vm214, %v600
        %633 = vst.msk [vmem:[%s173 + $0x58] sm:$0xff] %vm214, %v601
        %634 = vst.msk [vmem:[%s173 + $0x60] sm:$0xff] %vm214, %v602
        %635 = vst.msk [vmem:[%s173 + $0x68] sm:$0xff] %vm214, %v603
        %636 = vst.msk [vmem:[%s173 + $0x70] sm:$0xff] %vm214, %v604
        %637 = vst.msk [vmem:[%s173 + $0x78] sm:$0xff] %vm214, %v605
        %638 = vst.msk [vmem:[%s173 + $0x80] sm:$0xff] %vm214, %v606
        %639 = vst.msk [vmem:[%s173 + $0x88] sm:$0xff] %vm214, %v607
        %640 = vst.msk [vmem:[%s173 + $0x90] sm:$0xff] %vm214, %v608
        %641 = vst.msk [vmem:[%s173 + $0x98] sm:$0xff] %vm214, %v609
        %642 = vst.msk [vmem:[%s173 + $0xa0] sm:$0xff] %vm214, %v610
        %643 = vst.msk [vmem:[%s173 + $0xa8] sm:$0xff] %vm214, %v611
        %644 = vst.msk [vmem:[%s173 + $0xb0] sm:$0xff] %vm214, %v612
        %645 = vst.msk [vmem:[%s173 + $0xb8] sm:$0xff] %vm214, %v613
        %646 = vst.msk [vmem:[%s173 + $0xc0] sm:$0xff] %vm214, %v614
        %647 = vst.msk [vmem:[%s173 + $0xc8] sm:$0xff] %vm214, %v615
        %648 = vst.msk [vmem:[%s173 + $0xd0] sm:$0xff] %vm214, %v616
        %649 = vst.msk [vmem:[%s173 + $0xd8] sm:$0xff] %vm214, %v617
        %650 = vst.msk [vmem:[%s173 + $0xe0] sm:$0xff] %vm214, %v618
        %651 = vst.msk [vmem:[%s173 + $0xe8] sm:$0xff] %vm214, %v619
        %652 = vst.msk [vmem:[%s173 + $0xf0] sm:$0xff] %vm214, %v620
        %653 = vst.msk [vmem:[%s173 + $0xf8] sm:$0xff] %vm214, %v621
        %s654 = sand.u32 %s75, 1
        %s655 = scalar_lea.sflag [#allocation5], %s654
        %s656 = sand.u32 %s75, 1
        %s657 = smul.addr %s656, 256
        %s658 = scalar_lea.vmem [#allocation8], %s657
        // Predicated region
        $region37: #{tpu_custom_call.1} parent=27 // pred_check
          %p659 = pneg %p85
        $region38: #{tpu_custom_call.1} parent=27 // pred_check_branch
          %661 = sbr.rel (%p659) target = $region40
        $region39: #{tpu_custom_call.1} parent=27 // pred_region
          %s663 = ssub.s32 4096, 4096
          %664 = vsyncadd %s655, %s663
          %s665 = smul.addr %s20, 32
          %s666 = smul.addr %s665, 128
          %s667 = scalar_lea.hbm %s2, %s666
          %s668 = sshll.u32 %s658, 4
          %s669 = int_to_ptr.vmem [resolvable:$true] %s668
          %674 = dma.vmem_to_hbm [thread:$0]  %s669, 4096, %s667, %s655, 128, 128, 8
        $region40: #{tpu_custom_call.1} parent=27 // pred_fallthru
          _
      $region28: #{tpu_custom_call.1} parent=5 // pred_fallthru
        _
      %p675 = scmp.le.s32.totalorder 2, %s15
      // Predicated region
      $region41: #{tpu_custom_call.1} parent=5 // pred_check
        %p676 = pneg %p675
      $region42: #{tpu_custom_call.1} parent=5 // pred_check_branch
        %678 = sbr.rel (%p676) target = $region44
      $region43: #{tpu_custom_call.1} parent=5 // pred_region
        %s679 = ssub.s32 %s15, 2
        // Predicated region
        $region45: #{tpu_custom_call.1} parent=43 // pred_check
          %p680 = pneg %p91
        $region46: #{tpu_custom_call.1} parent=43 // pred_check_branch
          %682 = sbr.rel (%p680) target = $region48
        $region47: #{tpu_custom_call.1} parent=43 // pred_region
          %s683 = sand.u32 %s76, 1
          %s684 = scalar_lea.sflag [#allocation5], %s683
          %s685 = sand.u32 %s76, 1
          %s686 = smul.addr %s685, 256
          %s687 = scalar_lea.vmem [#allocation8], %s686
          %688 = dma.done %s684, 4096
        $region48: #{tpu_custom_call.1} parent=43 // pred_fallthru
          _
      $region44: #{tpu_custom_call.1} parent=5 // pred_fallthru
        _
    $region6: #{tpu_custom_call.1} parent=1 // loop_footer
      %s19 = sadd.s32 1, %s15
    $region7: #{tpu_custom_call.1} parent=1 // loop_footer_branch
      %14 = sbr.rel target = $region3
    $region8: #{tpu_custom_call.1} parent=1 // loop_exit
      _
    %689 = vsyncpa [#allocation4], 1
    %s690 = scalar_lea.sflag [#allocation4], 1
    %691 = vsyncpa %s690, 1
    %692 = vsyncpa [#allocation5], 1
    %s693 = scalar_lea.sflag [#allocation5], 1
    %694 = vsyncpa %s693, 1
    %695 = vsyncpa [#allocation6], 1
    %s696 = scalar_lea.sflag [#allocation6], 1
    %697 = vsyncpa %s696, 1

</llo_original>
